<compile_context>
chip_gen: v5e
topology: v5e:2x2
jax: 0.10.0
libtpu: 0.0.40
codegen_flags: <defaults>
</compile_context>

<pallas_src>
import math
import functools

import jax
import jax.numpy as jnp
from jax.experimental import pallas as pl
from jax.experimental.pallas import tpu as pltpu


def make_positional_encoding_buffer(model_dim: int, max_len: int) -> jnp.ndarray:
    """Deterministic `pe` buffer, identical math to the PyTorch __init__."""
    position = jnp.arange(max_len, dtype=jnp.float32)[:, None]              # (max_len, 1)
    div_term = jnp.exp(
        jnp.arange(0, model_dim, 2, dtype=jnp.float32)
        * (-math.log(10000.0) / model_dim)
    )                                                                        # (model_dim//2,)
    pe = jnp.zeros((max_len, 1, model_dim), jnp.float32)
    pe = pe.at[:, 0, 0::2].set(jnp.sin(position * div_term))
    pe = pe.at[:, 0, 1::2].set(jnp.cos(position * div_term))
    return pe


def _pos_enc_kernel(seed_ref, x_ref, pe_ref, o_ref, *,
                    batch, keep_threshold, inv_keep_prob, apply_dropout):
    # x_ref: (ts, B*D) VMEM, pe_ref: (ts, D) VMEM (batch dim squeezed),
    # seed_ref: (1,) SMEM scalar-prefetch.
    pe_tile = pe_ref[...].astype(x_ref.dtype)                     # (ts, D)
    if batch > 1:
        pe_tile = jnp.concatenate([pe_tile] * batch, axis=1)      # (ts, B*D)
    y = x_ref[...] + pe_tile                                      # single fused add

    if apply_dropout:
        ts, w = y.shape                                           # static block shape
        # Counter-based hash (splitmix32) of global element index + seed.
        row = jax.lax.broadcasted_iota(jnp.uint32, (ts, w), 0)
        col = jax.lax.broadcasted_iota(jnp.uint32, (ts, w), 1)
        g_row = pl.program_id(0).astype(jnp.uint32) * jnp.uint32(ts) + row
        z = g_row * jnp.uint32(w) + col
        z = z + seed_ref[0].astype(jnp.uint32) * jnp.uint32(0x9E3779B9)
        z = (z ^ (z >> 16)) * jnp.uint32(0x7FEB352D)
        z = (z ^ (z >> 15)) * jnp.uint32(0x846CA68B)
        z = z ^ (z >> 16)
        # Integer threshold compare: keep with prob keep_prob, no float convert.
        keep = z < jnp.uint32(keep_threshold)
        y = jnp.where(keep, y * jnp.asarray(inv_keep_prob, y.dtype),
                      jnp.zeros_like(y))

    o_ref[...] = y.astype(o_ref.dtype)                            # single lane-dense store


def positional_encoding(x, pe, *, seed=0, dropout_p=0.5, training=True):
    """x: (seq_len, batch, model_dim); pe: (max_len, 1, model_dim)."""
    S, B, D = x.shape
    assert pe.shape[0] >= S and pe.shape[2] == D

    keep_prob = 1.0 - float(dropout_p)
    apply_dropout = bool(training) and dropout_p > 0.0
    keep_threshold = min(int(keep_prob * (1 << 32)), (1 << 32) - 1)
    inv_keep_prob = (1.0 / keep_prob) if keep_prob > 0.0 else 0.0

    # Lane-dense 2D view: rows are full (batch * model_dim) contiguous slabs.
    width = B * D
    x2 = x.reshape(S, width)

    # Row-block size: ~2 MiB per input block (with in/out double buffering this
    # stays well inside the default scoped VMEM on v5e/v6e/v7x).
    itemsize = jnp.dtype(x.dtype).itemsize
    target_block_bytes = 2 * 1024 * 1024
    ts = max(1, target_block_bytes // max(width * itemsize, 1))
    if ts < S:
        ts = max(8, (ts // 8) * 8)      # sublane multiple when not full-extent
    ts = min(ts, S)
    grid = (pl.cdiv(S, ts),)

    kernel = functools.partial(
        _pos_enc_kernel, batch=B, keep_threshold=keep_threshold,
        inv_keep_prob=inv_keep_prob, apply_dropout=apply_dropout)

    grid_spec = pltpu.PrefetchScalarGridSpec(
        num_scalar_prefetch=1,                                  # seed lands in SMEM
        grid=grid,
        in_specs=[
            pl.BlockSpec((ts, width), lambda i, seed: (i, 0)),        # x rows
            pl.BlockSpec((ts, None, D), lambda i, seed: (i, 0, 0)),   # pe rows (squeeze dim 1)
        ],
        out_specs=pl.BlockSpec((ts, width), lambda i, seed: (i, 0)),
    )

    cost = pl.CostEstimate(
        flops=2 * S * width,
        transcendentals=0,
        bytes_accessed=int(itemsize * 2 * S * width + 4 * S * D),
    )

    out2 = pl.pallas_call(
        kernel,
        out_shape=jax.ShapeDtypeStruct((S, width), x.dtype),
        grid_spec=grid_spec,
        compiler_params=pltpu.CompilerParams(
            dimension_semantics=("parallel",)),                 # shard row-blocks across TCs
        cost_estimate=cost,
    )(jnp.asarray([seed], jnp.int32), x2, pe)

    return out2.reshape(S, B, D)


if __name__ == "__main__":
    seq_len, batch, model_dim = 8, 2, 32
    max_len = 64

    key = jax.random.PRNGKey(0)
    x = jax.random.normal(key, (seq_len, batch, model_dim), dtype=jnp.float32)
    pe = make_positional_encoding_buffer(model_dim, max_len)

    # Eval mode (dropout inactive): must match x + pe[:seq_len] exactly.
    y_eval = positional_encoding(x, pe, seed=0, dropout_p=0.5, training=False)
    jax.block_until_ready(y_eval)
    ref = x + pe[:seq_len]
    assert jnp.allclose(y_eval, ref, atol=1e-6), "eval-mode mismatch vs reference"

    # Train mode (module default): inverted dropout with p=0.5.
    y_train = positional_encoding(x, pe, seed=1234, dropout_p=0.5, training=True)
    jax.block_until_ready(y_train)
    scaled_ref = 2.0 * ref
    ok = jnp.all(
        jnp.isclose(y_train, 0.0, atol=1e-6)
        | jnp.isclose(y_train, scaled_ref, atol=1e-5, rtol=1e-5)
    )
    assert bool(ok), "train-mode dropout output inconsistent"
    keep_frac = float(jnp.mean((jnp.abs(y_train) > 1e-6).astype(jnp.float32)))
    assert 0.2 < keep_frac < 0.8, f"dropout keep fraction implausible: {keep_frac}"

    print("KERNEL_OK")
</pallas_src>

<mosaic_0001>
module attributes {stable_mosaic.version = 11 : i64} {
  func.func @_pos_enc_kernel(%arg0: i32, %arg1: memref<1xi32, #tpu.memory_space<smem>>, %arg2: memref<8x64xf32, #tpu.memory_space<vmem>>, %arg3: memref<8x1x32xf32, #tpu.memory_space<vmem>>, %arg4: memref<8x64xf32, #tpu.memory_space<vmem>>) attributes {dimension_semantics = [#tpu.dimension_semantics<parallel>], iteration_bounds = array<i64: 1>, scalar_prefetch = 1 : i64, scratch_operands = 0 : i64, tpu.core_type = #tpu.core_type<tc>, window_params = [{transform_indices = @transform_0, window_bounds = array<i64: 8, 64>}, {transform_indices = @transform_1, window_bounds = array<i64: 8, 1, 32>}, {transform_indices = @transform_2, window_bounds = array<i64: 8, 64>}]} {
    %c0 = arith.constant 0 : index
    %c0_0 = arith.constant 0 : index
    %c0_1 = arith.constant 0 : index
    %0 = vector.load %arg3[%c0, %c0_0, %c0_1] : memref<8x1x32xf32, #tpu.memory_space<vmem>>, vector<8x1x32xf32>
    %1 = vector.shape_cast %0 : vector<8x1x32xf32> to vector<8x32xf32>
    %2 = tpu.concatenate %1, %1 in 1 : vector<8x32xf32>, vector<8x32xf32> -> vector<8x64xf32>
    %c0_2 = arith.constant 0 : index
    %c0_3 = arith.constant 0 : index
    %3 = vector.load %arg2[%c0_2, %c0_3] : memref<8x64xf32, #tpu.memory_space<vmem>>, vector<8x64xf32>
    %4 = arith.addf %3, %2 : vector<8x64xf32>
    %c0_4 = arith.constant 0 : index
    %c0_5 = arith.constant 0 : index
    %5 = vector.load %arg4[%c0_4, %c0_5] : memref<8x64xf32, #tpu.memory_space<vmem>>, vector<8x64xf32>
    tpu.vector_store %arg4[%c0_4, %c0_5], %4 {strides = array<i32>} : memref<8x64xf32, #tpu.memory_space<vmem>>, vector<8x64xf32>,
    return
  }
  func.func @transform_0(%arg0: i32, %arg1: memref<1xi32, #tpu.memory_space<smem>>) -> (i32, i32) {
    %c0_i32 = arith.constant 0 : i32
    %c0_i32_0 = arith.constant 0 : i32
    return %arg0, %c0_i32 : i32, i32
  }
  func.func @transform_1(%arg0: i32, %arg1: memref<1xi32, #tpu.memory_space<smem>>) -> (i32, i32, i32) {
    %c0_i32 = arith.constant 0 : i32
    %c0_i32_0 = arith.constant 0 : i32
    %c0_i32_1 = arith.constant 0 : i32
    return %arg0, %c0_i32, %c0_i32_0 : i32, i32, i32
  }
  func.func @transform_2(%arg0: i32, %arg1: memref<1xi32, #tpu.memory_space<smem>>) -> (i32, i32) {
    %c0_i32 = arith.constant 0 : i32
    %c0_i32_0 = arith.constant 0 : i32
    return %arg0, %c0_i32 : i32, i32
  }
}

</mosaic_0001>

<llo_original>
// kernel: tpu_custom_call.1
$region0: #{tpu_custom_call.1}
  #allocation0 [shape = 'u32[]', space=smem, size = 0x4, offset = 0x4, fixed_abs, tag = 'smem constant byte address 0x4 - core index']
  #allocation1 [shape = 'u32[72,128]{1,0:T(1,128)}', space=vmem, size = 0x9000, scoped, tag = 'internal scratch']
  #allocation2 [shape = 's32[1]{0}', space=sflag, size = 0x4, scoped, tag = 'scoped memory for tpu_custom_call.1']
  #allocation3 [shape = 's32[1]{0:T(128)S(6)}', space=smem, size = 0x200, scoped, tag = 'prefetched SMEM operand 0']
  %s0 = inlined_call_operand.<no memory space> [shape: s32[1], index: 0, kind: input, shape index: {}]
  %s1 = inlined_call_operand.vmem [shape: f32[8,64], index: 1, kind: input, shape index: {}]
  %s2 = inlined_call_operand.vmem [shape: f32[64,1,32], index: 2, kind: input, shape index: {}]
  %s3 = inlined_call_operand.hbm [shape: f32[8,64], index: 3, kind: output, shape index: {}]
  %s4 = sld [smem:[#allocation0]]
  $region18: #{tpu_custom_call.1} parent=0
    _
  %s6 = ssub.s32 1, %s4
  %s7 = scalar_select 0, %s6, %s4
  %8 = sst [smem:[#allocation3]] %s0
  $region1: #{tpu_custom_call.1} parent=0
    #allocation4 [shape = 'u8[4096]{0}', space=vmem, size = 0x1000, scoped, tag = 'output window, operand 0, single buffered']
    #allocation5 [shape = 's32[1]{0}', space=sflag, size = 0x4, scoped, tag = 'scoped memory for tpu_custom_call.1']
    %9 = vsyncpa [#allocation5], 0
    // Predicated region
    $region2: #{tpu_custom_call.1} parent=1 // pred_check
      _
    $region3: #{tpu_custom_call.1} parent=1 // pred_check_branch
      %11 = sbr.rel (0) target = $region5
    $region4: #{tpu_custom_call.1} parent=1 // pred_region
      _
    $region5: #{tpu_custom_call.1} parent=1 // pred_fallthru
      _
    // Predicated region
    $region6: #{tpu_custom_call.1} parent=1 // pred_check
      _
    $region7: #{tpu_custom_call.1} parent=1 // pred_check_branch
      %13 = sbr.rel (0) target = $region9
    $region8: #{tpu_custom_call.1} parent=1 // pred_region
      _
    $region9: #{tpu_custom_call.1} parent=1 // pred_fallthru
      _
    %v14 = vld [vmem:[%s2] sm:$0x1]
    %v15 = vld [vmem:[%s2 + $0x1] sm:$0x1]
    %v16 = vld [vmem:[%s2 + $0x2] sm:$0x1]
    %v17 = vld [vmem:[%s2 + $0x3] sm:$0x1]
    %v18 = vld [vmem:[%s2 + $0x4] sm:$0x1]
    %v19 = vld [vmem:[%s2 + $0x5] sm:$0x1]
    %v20 = vld [vmem:[%s2 + $0x6] sm:$0x1]
    %v21 = vld [vmem:[%s2 + $0x7] sm:$0x1]
    %30 = vst [vmem:[#allocation1] ss:$9 sm:$0xff] %v14
    %s31 = scalar_lea.vmem [#allocation1], 1
    %32 = vst [vmem:[%s31] ss:$9 sm:$0xff] %v15
    %s33 = scalar_lea.vmem [#allocation1], 2
    %34 = vst [vmem:[%s33] ss:$9 sm:$0xff] %v16
    %s35 = scalar_lea.vmem [#allocation1], 3
    %36 = vst [vmem:[%s35] ss:$9 sm:$0xff] %v17
    %s37 = scalar_lea.vmem [#allocation1], 4
    %38 = vst [vmem:[%s37] ss:$9 sm:$0xff] %v18
    %s39 = scalar_lea.vmem [#allocation1], 5
    %40 = vst [vmem:[%s39] ss:$9 sm:$0xff] %v19
    %s41 = scalar_lea.vmem [#allocation1], 6
    %42 = vst [vmem:[%s41] ss:$9 sm:$0xff] %v20
    %s43 = scalar_lea.vmem [#allocation1], 7
    %44 = vst [vmem:[%s43] ss:$9 sm:$0xff] %v21
    %v45 = vld [vmem:[#allocation1] sm:$0xff]
    %47 = vst [vmem:[#allocation1] ss:$9 sm:$0xff] %v14
    %s48 = scalar_lea.vmem [#allocation1], 1
    %49 = vst [vmem:[%s48] ss:$9 sm:$0xff] %v15
    %s50 = scalar_lea.vmem [#allocation1], 2
    %51 = vst [vmem:[%s50] ss:$9 sm:$0xff] %v16
    %s52 = scalar_lea.vmem [#allocation1], 3
    %53 = vst [vmem:[%s52] ss:$9 sm:$0xff] %v17
    %s54 = scalar_lea.vmem [#allocation1], 4
    %55 = vst [vmem:[%s54] ss:$9 sm:$0xff] %v18
    %s56 = scalar_lea.vmem [#allocation1], 5
    %57 = vst [vmem:[%s56] ss:$9 sm:$0xff] %v19
    %s58 = scalar_lea.vmem [#allocation1], 6
    %59 = vst [vmem:[%s58] ss:$9 sm:$0xff] %v20
    %s60 = scalar_lea.vmem [#allocation1], 7
    %61 = vst [vmem:[%s60] ss:$9 sm:$0xff] %v21
    %v62 = vld [vmem:[#allocation1] sm:$0xff]
    %63 = vrot.lane.b32.xlu0 %v62, 32
    %v64 = vpop.permute.xlu0 %63
    %vm66 = vcmask 261120
    %v67 = vsel %vm66, %v45, %v64
    %v68 = vld [vmem:[%s1] sm:$0xff]
    %v69 = vadd.f32 %v68, %v67
    %vm70 = vcmask 523264
    %71 = vst.msk [vmem:[#allocation4] sm:$0xff] %vm70, %v69
    // Predicated region
    $region10: #{tpu_custom_call.1} parent=1 // pred_check
      _
    $region11: #{tpu_custom_call.1} parent=1 // pred_check_branch
      %73 = sbr.rel (0) target = $region13
    $region12: #{tpu_custom_call.1} parent=1 // pred_region
      %75 = vsyncadd [#allocation5], 0
      %s77 = sshll.u32 [#allocation4], 4
      %s78 = int_to_ptr.vmem [resolvable:$true] %s77
      %s79 = sshll.u32 %s3, 4
      %s80 = int_to_ptr.hbm [resolvable:$true] %s79
      %82 = dma.vmem_to_hbm [thread:$0]  %s78, 128, %s80, [#allocation5]
    $region13: #{tpu_custom_call.1} parent=1 // pred_fallthru
      _
    // Predicated region
    $region14: #{tpu_custom_call.1} parent=1 // pred_check
      _
    $region15: #{tpu_custom_call.1} parent=1 // pred_check_branch
      %84 = sbr.rel (0) target = $region17
    $region16: #{tpu_custom_call.1} parent=1 // pred_region
      %86 = dma.done [#allocation5], 128
    $region17: #{tpu_custom_call.1} parent=1 // pred_fallthru
      _
    %87 = vsyncpa [#allocation5], 1

</llo_original>
